<compile_context>
chip_gen: v6e
topology: v6e:2x2x1
jax: 0.10.0
libtpu: 0.0.40
codegen_flags: <defaults>
</compile_context>

<pallas_src>
import functools

import jax
import jax.numpy as jnp
from jax.experimental import pallas as pl
from jax.experimental.pallas import tpu as pltpu


def _cfconv_kernel(gamma, block_b, ci_ref, cj_ref, mu_ref, w_ref, b_ref, o_ref):
    # ci_ref / cj_ref : (block_b, 3, N*N)  endpoint coords per pair, pairs on lanes
    # mu_ref          : (D, 1)             sqrt(gamma) * mu_k
    # w_ref           : (F, D)             torch-native nn.Linear weight
    # b_ref           : (F, 1)             bias
    # o_ref           : (block_b, F, N*N)  lane-dense output slab
    nn_pairs = ci_ref.shape[-1]
    d = mu_ref.shape[0]
    f = w_ref.shape[0]

    # Hoist grid-step-invariant loads/broadcasts (JAX does not CSE broadcast_in_dim).
    mu_b = jnp.broadcast_to(mu_ref[...], (d, nn_pairs))   # (D, N*N)
    b_b = jnp.broadcast_to(b_ref[...], (f, nn_pairs))     # (F, N*N)
    w = w_ref[...]                                        # (F, D)

    for t in range(block_b):                              # small, unrolled
        diff = ci_ref[t] - cj_ref[t]                      # (3, N*N), lane-dense
        d2 = jnp.sum(diff * diff, axis=0, keepdims=True)  # (1, N*N), sublane reduce over 3
        dist_s = jnp.sqrt(d2 * gamma)                     # sqrt(gamma) * ||ci - cj||
        delta = dist_s - mu_b                             # (D, N*N)
        rbf = jnp.exp(-(delta * delta))                   # (D, N*N)  lane-dense EUP stream
        out = jnp.dot(w, rbf, preferred_element_type=jnp.float32) + b_b   # (F, N*N)
        o_ref[t] = out.astype(o_ref.dtype)


def _pick_block_b(B, N, D, F):
    """Batch elements per grid step: amortize ~0.35us/step overhead but keep
    >= 2 grid steps (v7x has 2 TensorCores) and stay well inside VMEM."""
    NN = N * N
    # double-buffered ci+cj inputs, double-buffered output, live rbf/delta (f32)
    per_b = 4 * (2 * (2 * 3 * NN) + 2 * (F * NN) + 2 * (D * NN))
    budget = 8 * 1024 * 1024
    tb = max(1, min(B, budget // max(per_b, 1)))
    if B >= 2:
        tb = min(tb, max(B // 2, 1))      # keep at least 2 parallel grid steps
    while B % tb:                         # make it divide B
        tb -= 1
    return max(tb, 1)


def cfconv_forward(coordinates, mu_k, w_fd, b, gamma, *, block_b=None):
    """coordinates: (B, N, 3) f32; mu_k: (D,); w_fd: (F, D) torch layout; b: (F,)
    -> (B, N, N, F), matching CfConv.forward."""
    B, N, _ = coordinates.shape
    D = mu_k.shape[-1]
    F = w_fd.shape[0]
    NN = N * N

    if block_b is None:
        block_b = _pick_block_b(B, N, D, F)
    assert B % block_b == 0

    # Lane-dense pairwise slabs (wrapper-side layout plumbing, no arithmetic):
    #   ci[b, :, i*N + j] = coords[b, i, :],   cj[b, :, i*N + j] = coords[b, j, :]
    c_t = jnp.transpose(coordinates.astype(jnp.float32), (0, 2, 1))   # (B, 3, N)
    ci = jnp.repeat(c_t, N, axis=2)                                   # (B, 3, N*N)
    cj = jnp.tile(c_t, (1, 1, N))                                     # (B, 3, N*N)

    # Fold gamma into the RBF centers; bias as a lane-broadcastable column.
    mu_s = (jnp.sqrt(jnp.float32(gamma)) * mu_k.astype(jnp.float32)).reshape(D, 1)
    b_col = b.astype(jnp.float32).reshape(F, 1)
    w_fd = w_fd.astype(jnp.float32)

    kernel = functools.partial(_cfconv_kernel, float(gamma), int(block_b))

    # Only raise the scoped-VMEM limit when blocks actually get big (large N /
    # block_b); cap below v7x's 64 MiB physical VMEM.
    block_bytes = 4 * block_b * (2 * 2 * 3 * NN + 2 * F * NN + 2 * D * NN)
    compiler_kwargs = {"dimension_semantics": ("parallel",)}
    if block_bytes > 12 * 1024 * 1024:
        compiler_kwargs["vmem_limit_bytes"] = int(min(2 * block_bytes, 48 * 1024 * 1024))

    out = pl.pallas_call(
        kernel,
        out_shape=jax.ShapeDtypeStruct((B, F, NN), jnp.float32),
        grid_spec=pltpu.PrefetchScalarGridSpec(
            num_scalar_prefetch=0,
            grid=(B // block_b,),
            in_specs=[
                pl.BlockSpec((block_b, 3, NN), lambda bi: (bi, 0, 0)),
                pl.BlockSpec((block_b, 3, NN), lambda bi: (bi, 0, 0)),
                pl.BlockSpec((D, 1), lambda bi: (0, 0)),
                pl.BlockSpec((F, D), lambda bi: (0, 0)),
                pl.BlockSpec((F, 1), lambda bi: (0, 0)),
            ],
            out_specs=pl.BlockSpec((block_b, F, NN), lambda bi: (bi, 0, 0)),
        ),
        compiler_params=pltpu.CompilerParams(**compiler_kwargs),
    )(ci, cj, mu_s, w_fd, b_col)

    # (B, F, N*N) -> (B, N, N, F): PyTorch output axis order.
    return jnp.transpose(out, (0, 2, 1)).reshape(B, N, N, F)


def cfconv_reference(coordinates, mu_k, w_fd, b, gamma):
    """Pure-JAX reference mirroring the PyTorch forward (w_fd is torch (F, D))."""
    diff = coordinates[:, :, None, :] - coordinates[:, None, :, :]   # (B,N,N,3)
    adj = jnp.sqrt(jnp.sum(diff * diff, axis=-1))                    # (B,N,N)
    delta = adj[..., None] - mu_k.reshape(1, 1, 1, -1)               # (B,N,N,D)
    rbf = jnp.exp(-gamma * delta * delta)
    return jnp.einsum("bijd,fd->bijf", rbf, w_fd,
                      precision=jax.lax.Precision.HIGHEST) + b       # (B,N,N,F)


if __name__ == "__main__":
    # Module hyperparameters (defaults of CfConv.__init__).
    F_out = 16
    d_min, d_max, interval, gamma = 0.0, 2.0, 0.1, 10.0
    D = int(abs(d_max - d_min) / interval)                           # 20
    mu_k = jnp.arange(d_min, d_max, interval, dtype=jnp.float32)     # (20,)

    # Deterministic parameter init, torch-native nn.Linear(D, F) weight layout (F, D).
    key = jax.random.PRNGKey(0)
    k_w, k_b, k_x = jax.random.split(key, 3)
    bound = 1.0 / float(D) ** 0.5
    W_fd = jax.random.uniform(k_w, (F_out, D), jnp.float32, -bound, bound)
    b = jax.random.uniform(k_b, (F_out,), jnp.float32, -bound, bound)

    # Small example input: batch=2, N_v=16 vertices, xyz coordinates.
    B, N = 2, 16
    coordinates = jax.random.uniform(k_x, (B, N, 3), dtype=jnp.float32)

    out = cfconv_forward(coordinates, mu_k, W_fd, b, gamma)
    out = jax.block_until_ready(out)

    ref = cfconv_reference(coordinates, mu_k, W_fd, b, gamma)
    assert out.shape == (B, N, N, F_out), out.shape
    assert jnp.allclose(out, ref, atol=1e-4, rtol=1e-4), "mismatch vs reference"

    print("KERNEL_OK")
</pallas_src>

<mosaic_0001>
module attributes {stable_mosaic.version = 11 : i64} {
  func.func @_cfconv_kernel(%arg0: i32, %arg1: memref<1x3x256xf32, #tpu.memory_space<vmem>>, %arg2: memref<1x3x256xf32, #tpu.memory_space<vmem>>, %arg3: memref<20x1xf32, #tpu.memory_space<vmem>>, %arg4: memref<16x20xf32, #tpu.memory_space<vmem>>, %arg5: memref<16x1xf32, #tpu.memory_space<vmem>>, %arg6: memref<1x16x256xf32, #tpu.memory_space<vmem>>) attributes {dimension_semantics = [#tpu.dimension_semantics<parallel>], iteration_bounds = array<i64: 2>, scalar_prefetch = 0 : i64, scratch_operands = 0 : i64, tpu.core_type = #tpu.core_type<tc>, window_params = [{transform_indices = @transform_0, window_bounds = array<i64: 1, 3, 256>}, {transform_indices = @transform_1, window_bounds = array<i64: 1, 3, 256>}, {pipeline_mode = #tpu.pipeline_mode<synchronous>, transform_indices = @transform_2, window_bounds = array<i64: 20, 1>}, {pipeline_mode = #tpu.pipeline_mode<synchronous>, transform_indices = @transform_3, window_bounds = array<i64: 16, 20>}, {pipeline_mode = #tpu.pipeline_mode<synchronous>, transform_indices = @transform_4, window_bounds = array<i64: 16, 1>}, {transform_indices = @transform_5, window_bounds = array<i64: 1, 16, 256>}]} {
    %c0 = arith.constant 0 : index
    %c0_0 = arith.constant 0 : index
    %0 = vector.load %arg3[%c0, %c0_0] : memref<20x1xf32, #tpu.memory_space<vmem>>, vector<20x1xf32>
    %1 = vector.shape_cast %0 : vector<20x1xf32> to vector<20x1xf32>
    %2 = vector.broadcast %1 : vector<20x1xf32> to vector<20x256xf32>
    %c0_1 = arith.constant 0 : index
    %c0_2 = arith.constant 0 : index
    %3 = vector.load %arg5[%c0_1, %c0_2] : memref<16x1xf32, #tpu.memory_space<vmem>>, vector<16x1xf32>
    %4 = vector.shape_cast %3 : vector<16x1xf32> to vector<16x1xf32>
    %5 = vector.broadcast %4 : vector<16x1xf32> to vector<16x256xf32>
    %c0_3 = arith.constant 0 : index
    %c0_4 = arith.constant 0 : index
    %6 = vector.load %arg4[%c0_3, %c0_4] : memref<16x20xf32, #tpu.memory_space<vmem>>, vector<16x20xf32>
    %c0_5 = arith.constant 0 : index
    %c0_6 = arith.constant 0 : index
    %c0_7 = arith.constant 0 : index
    %7 = vector.load %arg1[%c0_5, %c0_6, %c0_7] : memref<1x3x256xf32, #tpu.memory_space<vmem>>, vector<1x3x256xf32>
    %8 = vector.shape_cast %7 : vector<1x3x256xf32> to vector<3x256xf32>
    %c0_8 = arith.constant 0 : index
    %c0_9 = arith.constant 0 : index
    %c0_10 = arith.constant 0 : index
    %9 = vector.load %arg2[%c0_8, %c0_9, %c0_10] : memref<1x3x256xf32, #tpu.memory_space<vmem>>, vector<1x3x256xf32>
    %10 = vector.shape_cast %9 : vector<1x3x256xf32> to vector<3x256xf32>
    %11 = arith.subf %8, %10 : vector<3x256xf32>
    %12 = arith.mulf %11, %11 : vector<3x256xf32>
    %cst = arith.constant dense<0.000000e+00> : vector<256xf32>
    %13 = vector.multi_reduction <add>, %12, %cst [0] : vector<3x256xf32> to vector<256xf32>
    %14 = vector.shape_cast %13 : vector<256xf32> to vector<1x256xf32>
    %cst_11 = arith.constant 1.000000e+01 : f32
    %15 = vector.broadcast %cst_11 : f32 to vector<1x256xf32>
    %16 = arith.mulf %14, %15 : vector<1x256xf32>
    %17 = math.sqrt %16 : vector<1x256xf32>
    %18 = vector.broadcast %17 : vector<1x256xf32> to vector<20x256xf32>
    %19 = arith.subf %18, %2 : vector<20x256xf32>
    %20 = arith.mulf %19, %19 : vector<20x256xf32>
    %cst_12 = arith.constant 0.000000e+00 : f32
    %21 = vector.broadcast %cst_12 : f32 to vector<20x256xf32>
    %22 = arith.subf %21, %20 : vector<20x256xf32>
    %23 = math.exp %22 : vector<20x256xf32>
    %cst_13 = arith.constant dense<0.000000e+00> : vector<16x256xf32>
    %24 = tpu.matmul %6, %23, %cst_13 {dimension_numbers = #tpu.dot_dimension_numbers<[1], [0], [0], [1], [0, 0, 1, 1], [], []>} : vector<16x20xf32>, vector<20x256xf32>, vector<16x256xf32> -> vector<16x256xf32>
    %25 = arith.addf %24, %5 : vector<16x256xf32>
    %c0_14 = arith.constant 0 : index
    %c0_15 = arith.constant 0 : index
    %c0_16 = arith.constant 0 : index
    %26 = vector.load %arg6[%c0_14, %c0_15, %c0_16] : memref<1x16x256xf32, #tpu.memory_space<vmem>>, vector<1x16x256xf32>
    %27 = vector.shape_cast %26 : vector<1x16x256xf32> to vector<16x256xf32>
    %28 = vector.shape_cast %25 : vector<16x256xf32> to vector<1x16x256xf32>
    tpu.vector_store %arg6[%c0_14, %c0_15, %c0_16], %28 {strides = array<i32>} : memref<1x16x256xf32, #tpu.memory_space<vmem>>, vector<1x16x256xf32>,
    return
  }
  func.func @transform_0(%arg0: i32) -> (i32, i32, i32) {
    %c0_i32 = arith.constant 0 : i32
    %c0_i32_0 = arith.constant 0 : i32
    %c0_i32_1 = arith.constant 0 : i32
    return %arg0, %c0_i32, %c0_i32_0 : i32, i32, i32
  }
  func.func @transform_1(%arg0: i32) -> (i32, i32, i32) {
    %c0_i32 = arith.constant 0 : i32
    %c0_i32_0 = arith.constant 0 : i32
    %c0_i32_1 = arith.constant 0 : i32
    return %arg0, %c0_i32, %c0_i32_0 : i32, i32, i32
  }
  func.func @transform_2(%arg0: i32) -> (i32, i32) {
    %c0_i32 = arith.constant 0 : i32
    %c0_i32_0 = arith.constant 0 : i32
    %c0_i32_1 = arith.constant 0 : i32
    return %c0_i32, %c0_i32_0 : i32, i32
  }
  func.func @transform_3(%arg0: i32) -> (i32, i32) {
    %c0_i32 = arith.constant 0 : i32
    %c0_i32_0 = arith.constant 0 : i32
    %c0_i32_1 = arith.constant 0 : i32
    return %c0_i32, %c0_i32_0 : i32, i32
  }
  func.func @transform_4(%arg0: i32) -> (i32, i32) {
    %c0_i32 = arith.constant 0 : i32
    %c0_i32_0 = arith.constant 0 : i32
    %c0_i32_1 = arith.constant 0 : i32
    return %c0_i32, %c0_i32_0 : i32, i32
  }
  func.func @transform_5(%arg0: i32) -> (i32, i32, i32) {
    %c0_i32 = arith.constant 0 : i32
    %c0_i32_0 = arith.constant 0 : i32
    %c0_i32_1 = arith.constant 0 : i32
    return %arg0, %c0_i32, %c0_i32_0 : i32, i32, i32
  }
}

</mosaic_0001>

<llo_original>
// kernel: tpu_custom_call.1
$region0: #{tpu_custom_call.1}
  #allocation0 [shape = 'u32[]', space=smem, size = 0x4, offset = 0x4, fixed_abs, tag = 'smem constant byte address 0x4 - core index']
  #allocation1 [shape = 'u32[144,128]{1,0:T(1,128)}', space=vmem, size = 0x12000, scoped, tag = 'internal scratch']
  %s0 = inlined_call_operand.vmem [shape: f32[2,3,256], index: 0, kind: input, shape index: {}]
  %s1 = inlined_call_operand.vmem [shape: f32[2,3,256], index: 1, kind: input, shape index: {}]
  %s2 = inlined_call_operand.vmem [shape: f32[20,1], index: 2, kind: input, shape index: {}]
  %s3 = inlined_call_operand.vmem [shape: f32[16,20], index: 3, kind: input, shape index: {}]
  %s4 = inlined_call_operand.vmem [shape: f32[16,1], index: 4, kind: input, shape index: {}]
  %s5 = inlined_call_operand.hbm [shape: f32[2,16,256], index: 5, kind: output, shape index: {}]
  %s6 = sld [smem:[#allocation0]]
  $region53: #{tpu_custom_call.1} parent=0
    _
  %s8 = ssub.s32 1, %s6
  %s9 = scalar_select 0, %s8, %s6
  $region1: #{tpu_custom_call.1} parent=0
    #allocation2 [shape = 'u8[32768]{0}', space=vmem, size = 0x8000, scoped, tag = 'output window, operand 0']
    #allocation3 [shape = 's32[2]{0}', space=sflag, size = 0x8, scoped, tag = 'scoped memory for tpu_custom_call.1']
    %10 = vsyncpa [#allocation3], 0
    %s11 = scalar_lea.sflag [#allocation3], 1
    %12 = vsyncpa %s11, 0
    loop: start=0, step=1, limit=4
    $region2: #{tpu_custom_call.1} parent=1 // loop_pre_header
      _
    $region3: #{tpu_custom_call.1} parent=1 // loop_header
      %s14 = sphi 0, %s18
      %p15 = scmp.ge.s32.totalorder %s14, 4
      %s24 = sphi 0, %s26
      %s27 = sphi 0, %s24
      %s28 = sphi 0, %s27
      %s44 = sphi 0, %s28
      %s50 = sphi 0, %s52
      %s53 = sphi 0, %s50
      %s54 = sphi 0, %s53
      %s70 = sphi 0, %s54
      %s74 = sphi 0, %s74
      %s76 = sphi 0, %s74
      %s77 = sphi 0, %s76
      %s91 = sphi 0, %s77
      %s95 = sphi 0, %s95
      %s97 = sphi 0, %s95
      %s98 = sphi 0, %s97
      %s112 = sphi 0, %s98
      %s116 = sphi 0, %s116
      %s118 = sphi 0, %s116
      %s119 = sphi 0, %s118
      %s133 = sphi 0, %s119
      %s139 = sphi 0, %s141
      %s142 = sphi 0, %s139
      %s143 = sphi 0, %s142
      %s159 = sphi 0, %s143
    $region4: #{tpu_custom_call.1} parent=1 // loop_header_branch
      %17 = sbr.rel (%p15) target = $region8
    $region5: #{tpu_custom_call.1} parent=1 // loop_body
      %s19 = ssub.s32 %s14, 1
      %s20 = ssub.s32 %s14, 2
      %s21 = sadd.s32 %s14, 1
      %s22 = ssub.s32 %s14, %s21
      %p23 = scmp.eq.s32.totalorder %s22, 0
      %s25 = sadd.s32 %s24, 1
      %s26 = scalar_select %p23, %s24, %s25
      %p29 = pneg %p23
      %p30 = scmp.eq.s32.totalorder %s14, 1
      %p31 = por %p29, %p30
      %p32 = scmp.ne.s32.totalorder %s24, %s27
      %p33 = scmp.eq.s32.totalorder %s14, 0
      %p34 = por %p32, %p33
      %p35 = scmp.ne.s32.totalorder %s24, %s27
      %p36 = scmp.eq.s32.totalorder %s19, 1
      %p37 = por %p35, %p36
      %p38 = scmp.ne.s32.totalorder %s27, %s28
      %p39 = scmp.eq.s32.totalorder %s19, 0
      %p40 = por %p38, %p39
      %p41 = scmp.ne.s32.totalorder %s27, %s28
      %p42 = scmp.eq.s32.totalorder %s20, 1
      %p43 = por %p41, %p42
      %p45 = scmp.ne.s32.totalorder %s28, %s44
      %p46 = scmp.eq.s32.totalorder %s20, 0
      %p47 = por %p45, %p46
      %s48 = ssub.s32 %s14, %s21
      %p49 = scmp.eq.s32.totalorder %s48, 0
      %s51 = sadd.s32 %s50, 1
      %s52 = scalar_select %p49, %s50, %s51
      %p55 = pneg %p49
      %p56 = scmp.eq.s32.totalorder %s14, 1
      %p57 = por %p55, %p56
      %p58 = scmp.ne.s32.totalorder %s50, %s53
      %p59 = scmp.eq.s32.totalorder %s14, 0
      %p60 = por %p58, %p59
      %p61 = scmp.ne.s32.totalorder %s50, %s53
      %p62 = scmp.eq.s32.totalorder %s19, 1
      %p63 = por %p61, %p62
      %p64 = scmp.ne.s32.totalorder %s53, %s54
      %p65 = scmp.eq.s32.totalorder %s19, 0
      %p66 = por %p64, %p65
      %p67 = scmp.ne.s32.totalorder %s53, %s54
      %p68 = scmp.eq.s32.totalorder %s20, 1
      %p69 = por %p67, %p68
      %p71 = scmp.ne.s32.totalorder %s54, %s70
      %p72 = scmp.eq.s32.totalorder %s20, 0
      %p73 = por %p71, %p72
      %s75 = sadd.s32 %s74, 1
      %p78 = scmp.eq.s32.totalorder %s14, 1
      %p79 = scmp.ne.s32.totalorder %s74, %s76
      %p80 = scmp.eq.s32.totalorder %s14, 0
      %p81 = por %p79, %p80
      %p82 = scmp.ne.s32.totalorder %s74, %s76
      %p83 = scmp.eq.s32.totalorder %s19, 1
      %p84 = por %p82, %p83
      %p85 = scmp.ne.s32.totalorder %s76, %s77
      %p86 = scmp.eq.s32.totalorder %s19, 0
      %p87 = por %p85, %p86
      %p88 = scmp.ne.s32.totalorder %s76, %s77
      %p89 = scmp.eq.s32.totalorder %s20, 1
      %p90 = por %p88, %p89
      %p92 = scmp.ne.s32.totalorder %s77, %s91
      %p93 = scmp.eq.s32.totalorder %s20, 0
      %p94 = por %p92, %p93
      %s96 = sadd.s32 %s95, 1
      %p99 = scmp.eq.s32.totalorder %s14, 1
      %p100 = scmp.ne.s32.totalorder %s95, %s97
      %p101 = scmp.eq.s32.totalorder %s14, 0
      %p102 = por %p100, %p101
      %p103 = scmp.ne.s32.totalorder %s95, %s97
      %p104 = scmp.eq.s32.totalorder %s19, 1
      %p105 = por %p103, %p104
      %p106 = scmp.ne.s32.totalorder %s97, %s98
      %p107 = scmp.eq.s32.totalorder %s19, 0
      %p108 = por %p106, %p107
      %p109 = scmp.ne.s32.totalorder %s97, %s98
      %p110 = scmp.eq.s32.totalorder %s20, 1
      %p111 = por %p109, %p110
      %p113 = scmp.ne.s32.totalorder %s98, %s112
      %p114 = scmp.eq.s32.totalorder %s20, 0
      %p115 = por %p113, %p114
      %s117 = sadd.s32 %s116, 1
      %p120 = scmp.eq.s32.totalorder %s14, 1
      %p121 = scmp.ne.s32.totalorder %s116, %s118
      %p122 = scmp.eq.s32.totalorder %s14, 0
      %p123 = por %p121, %p122
      %p124 = scmp.ne.s32.totalorder %s116, %s118
      %p125 = scmp.eq.s32.totalorder %s19, 1
      %p126 = por %p124, %p125
      %p127 = scmp.ne.s32.totalorder %s118, %s119
      %p128 = scmp.eq.s32.totalorder %s19, 0
      %p129 = por %p127, %p128
      %p130 = scmp.ne.s32.totalorder %s118, %s119
      %p131 = scmp.eq.s32.totalorder %s20, 1
      %p132 = por %p130, %p131
      %p134 = scmp.ne.s32.totalorder %s119, %s133
      %p135 = scmp.eq.s32.totalorder %s20, 0
      %p136 = por %p134, %p135
      %s137 = ssub.s32 %s14, %s21
      %p138 = scmp.eq.s32.totalorder %s137, 0
      %s140 = sadd.s32 %s139, 1
      %s141 = scalar_select %p138, %s139, %s140
      %p144 = pneg %p138
      %p145 = scmp.eq.s32.totalorder %s14, 1
      %p146 = por %p144, %p145
      %p147 = scmp.ne.s32.totalorder %s139, %s142
      %p148 = scmp.eq.s32.totalorder %s14, 0
      %p149 = por %p147, %p148
      %p150 = scmp.ne.s32.totalorder %s139, %s142
      %p151 = scmp.eq.s32.totalorder %s19, 1
      %p152 = por %p150, %p151
      %p153 = scmp.ne.s32.totalorder %s142, %s143
      %p154 = scmp.eq.s32.totalorder %s19, 0
      %p155 = por %p153, %p154
      %p156 = scmp.ne.s32.totalorder %s142, %s143
      %p157 = scmp.eq.s32.totalorder %s20, 1
      %p158 = por %p156, %p157
      %p160 = scmp.ne.s32.totalorder %s143, %s159
      %p161 = scmp.eq.s32.totalorder %s20, 0
      %p162 = por %p160, %p161
      %p163 = scmp.le.s32.totalorder 1, %s14
      %p164 = scmp.lt.s32.totalorder %s14, 3
      %p165 = pnand %p163, %p164
      %p166 = pneg %p165
      // Predicated region
      $region9: #{tpu_custom_call.1} parent=5 // pred_check
        _
      $region10: #{tpu_custom_call.1} parent=5 // pred_check_branch
        %168 = sbr.rel (%p165) target = $region12
      $region11: #{tpu_custom_call.1} parent=5 // pred_region
        %s169 = ssub.s32 %s14, 1
        // Predicated region
        $region13: #{tpu_custom_call.1} parent=11 // pred_check
          %p170 = pneg %p87
        $region14: #{tpu_custom_call.1} parent=11 // pred_check_branch
          %172 = sbr.rel (%p170) target = $region16
        $region15: #{tpu_custom_call.1} parent=11 // pred_region
          _
        $region16: #{tpu_custom_call.1} parent=11 // pred_fallthru
          _
        // Predicated region
        $region17: #{tpu_custom_call.1} parent=11 // pred_check
          %p173 = pneg %p108
        $region18: #{tpu_custom_call.1} parent=11 // pred_check_branch
          %175 = sbr.rel (%p173) target = $region20
        $region19: #{tpu_custom_call.1} parent=11 // pred_region
          _
        $region20: #{tpu_custom_call.1} parent=11 // pred_fallthru
          _
        // Predicated region
        $region21: #{tpu_custom_call.1} parent=11 // pred_check
          %p176 = pneg %p129
        $region22: #{tpu_custom_call.1} parent=11 // pred_check_branch
          %178 = sbr.rel (%p176) target = $region24
        $region23: #{tpu_custom_call.1} parent=11 // pred_region
          _
        $region24: #{tpu_custom_call.1} parent=11 // pred_fallthru
          _
      $region12: #{tpu_custom_call.1} parent=5 // pred_fallthru
        _
      %p179 = scmp.lt.s32.totalorder %s14, 2
      // Predicated region
      $region25: #{tpu_custom_call.1} parent=5 // pred_check
        %p180 = pneg %p179
      $region26: #{tpu_custom_call.1} parent=5 // pred_check_branch
        %182 = sbr.rel (%p180) target = $region28
      $region27: #{tpu_custom_call.1} parent=5 // pred_region
        // Predicated region
        $region29: #{tpu_custom_call.1} parent=27 // pred_check
          %p183 = pneg %p34
        $region30: #{tpu_custom_call.1} parent=27 // pred_check_branch
          %185 = sbr.rel (%p183) target = $region32
        $region31: #{tpu_custom_call.1} parent=27 // pred_region
          %p186 = scmp.lt.s32.totalorder %s14, 1
          %s187 = scalar_select %p186, %s14, 1
          %s188 = smul.addr %s187, 2
          %s189 = smul.addr %s188, 4
          %s190 = scalar_lea.vmem %s0, %s189
        $region32: #{tpu_custom_call.1} parent=27 // pred_fallthru
          _
        // Predicated region
        $region33: #{tpu_custom_call.1} parent=27 // pred_check
          %p191 = pneg %p60
        $region34: #{tpu_custom_call.1} parent=27 // pred_check_branch
          %193 = sbr.rel (%p191) target = $region36
        $region35: #{tpu_custom_call.1} parent=27 // pred_region
          %p194 = scmp.lt.s32.totalorder %s14, 1
          %s195 = scalar_select %p194, %s14, 1
          %s196 = smul.addr %s195, 2
          %s197 = smul.addr %s196, 4
          %s198 = scalar_lea.vmem %s1, %s197
        $region36: #{tpu_custom_call.1} parent=27 // pred_fallthru
          _
      $region28: #{tpu_custom_call.1} parent=5 // pred_fallthru
        _
      %p199 = scmp.le.s32.totalorder 1, %s14
      %p200 = scmp.lt.s32.totalorder %s14, 3
      %p201 = pnand %p199, %p200
      %p202 = pneg %p201
      // Predicated region
      $region37: #{tpu_custom_call.1} parent=5 // pred_check
        _
      $region38: #{tpu_custom_call.1} parent=5 // pred_check_branch
        %204 = sbr.rel (%p201) target = $region40
      $region39: #{tpu_custom_call.1} parent=5 // pred_region
        %s205 = ssub.s32 %s14, 1
        %p206 = scmp.lt.s32.totalorder %s19, 1
        %s207 = scalar_select %p206, %s19, 1
        %s208 = smul.addr %s207, 2
        %s209 = smul.addr %s208, 4
        %s210 = scalar_lea.vmem %s0, %s209
        %p211 = pneg %p40
        %p212 = pneg %p37
        %p213 = scmp.lt.s32.totalorder %s19, 1
        %s214 = scalar_select %p213, %s19, 1
        %s215 = smul.addr %s214, 2
        %s216 = smul.addr %s215, 4
        %s217 = scalar_lea.vmem %s1, %s216
        %p218 = pneg %p66
        %p219 = pneg %p63
        %p220 = pneg %p87
        %p221 = pneg %p84
        %p222 = pneg %p108
        %p223 = pneg %p105
        %p224 = pneg %p129
        %p225 = pneg %p126
        %p226 = pneg %p155
        %p227 = pneg %p152
        %s228 = sand.u32 %s142, 1
        %s229 = scalar_lea.sflag [#allocation3], %s228
        %s230 = sand.u32 %s142, 1
        %s231 = smul.addr %s230, 32
        %s232 = scalar_lea.vmem [#allocation2], %s231
        %p233 = scmp.lt.s32.totalorder %s19, 1
        %s234 = scalar_select %p233, %s19, 1
        %s235 = smul.addr %s234, 2
        %s236 = smul.addr %s235, 4
        %s237 = scalar_lea.vmem %s0, %s236
        %p238 = scmp.lt.s32.totalorder %s19, 1
        %s239 = scalar_select %p238, %s19, 1
        %s240 = smul.addr %s239, 2
        %s241 = smul.addr %s240, 4
        %s242 = scalar_lea.vmem %s1, %s241
        %v243 = vld [vmem:[%s2] sm:$0xff]
        %v244 = vld [vmem:[%s2 + $0x8] sm:$0xff]
        %v245 = vld [vmem:[%s2 + $0x10] sm:$0xf]
        %247 = vset.pattern.permute.xlu0 0
        %248 = vperm.xlu0 %247, %v243
        %v249 = vpop.permute.xlu0 %248
        %252 = vset.pattern.permute.xlu0 0
        %253 = vperm.xlu0 %252, %v244
        %v254 = vpop.permute.xlu0 %253
        %257 = vset.pattern.permute.xlu0 0
        %258 = vperm.xlu0 %257, %v245
        %v259 = vpop.permute.xlu0 %258
        %v261 = vld [vmem:[%s4] sm:$0xff]
        %v262 = vld [vmem:[%s4 + $0x8] sm:$0xff]
        %264 = vset.pattern.permute.xlu0 0
        %265 = vperm.xlu0 %264, %v261
        %v266 = vpop.permute.xlu0 %265
        %269 = vset.pattern.permute.xlu0 0
        %270 = vperm.xlu0 %269, %v262
        %v271 = vpop.permute.xlu0 %270
        %v273 = vld [vmem:[%s3] sm:$0xff]
        %v274 = vld [vmem:[%s3 + $0x8] sm:$0xff]
        %v275 = vld [vmem:[%s237] sm:$0x77]
        %v276 = vld [vmem:[%s242] sm:$0x77]
        %v277 = vsub.f32 %v275, %v276
        %v278 = vmul.f32 %v277, %v277
        %v280 = vcombine.high %v278, %v278
        %vm282 = vcmask 1042432
        %v283 = vsel %vm282, %v278, 0.0
        %v284 = vrot.slane %v283, 4
        %v285 = vadd.f32 %v283, %v284
        %v286 = vrot.slane %v285, 2
        %v287 = vadd.f32 %v285, %v286
        %v288 = vrot.slane %v287, 1
        %v289 = vadd.f32 %v287, %v288
        %v290 = vsel %vm282, %v280, 0.0
        %v291 = vrot.slane %v290, 4
        %v292 = vadd.f32 %v290, %v291
        %v293 = vrot.slane %v292, 2
        %v294 = vadd.f32 %v292, %v293
        %v295 = vrot.slane %v294, 1
        %v296 = vadd.f32 %v294, %v295
        %v297 = vmul.f32 %v289, 10.0
        %v298 = vmul.f32 %v296, 10.0
        %v299 = vrsqrt.pop %v297
        %v300 = vmul.f32 %v297, %v299
        %vm301 = vcmp.eq.f32.partialorder %v297, inf
        %v302 = vsel %vm301, %v297, %v300
        %vm303 = vcmp.eq.f32.partialorder %v297, 0.0
        %v304 = vand.u32 %v297, 2147483648
        %v305 = vsel %vm303, %v304, %v302
        %v306 = vrsqrt.pop %v298
        %v307 = vmul.f32 %v298, %v306
        %vm308 = vcmp.eq.f32.partialorder %v298, inf
        %v309 = vsel %vm308, %v298, %v307
        %vm310 = vcmp.eq.f32.partialorder %v298, 0.0
        %v311 = vand.u32 %v298, 2147483648
        %v312 = vsel %vm310, %v311, %v309
        %v313 = vsub.f32 %v305, %v249
        %v314 = vsub.f32 %v312, %v249
        %v315 = vsub.f32 %v305, %v254
        %v316 = vsub.f32 %v312, %v254
        %v317 = vsub.f32 %v305, %v259
        %v318 = vsub.f32 %v312, %v259
        %v319 = vmul.f32 %v313, %v313
        %v320 = vmul.f32 %v314, %v314
        %v321 = vmul.f32 %v315, %v315
        %v322 = vmul.f32 %v316, %v316
        %v323 = vmul.f32 %v317, %v317
        %v324 = vmul.f32 %v318, %v318
        %v325 = vsub.f32 0.0, %v319
        %v326 = vsub.f32 0.0, %v320
        %v327 = vsub.f32 0.0, %v321
        %v328 = vsub.f32 0.0, %v322
        %v329 = vsub.f32 0.0, %v323
        %v330 = vsub.f32 0.0, %v324
        %v331 = vmul.f32 %v325, 1.442695
        %v332 = vpow.pop %v331
        %v333 = vmul.f32 %v326, 1.442695
        %v334 = vpow.pop %v333
        %v335 = vmul.f32 %v327, 1.442695
        %v336 = vpow.pop %v335
        %v337 = vmul.f32 %v328, 1.442695
        %v338 = vpow.pop %v337
        %v339 = vmul.f32 %v329, 1.442695
        %v340 = vpow.pop %v339
        %v341 = vmul.f32 %v330, 1.442695
        %v342 = vpow.pop %v341
        %vm343 = vcmask 162816
        %v345 = vsel %vm343, %v273, 0
        %v348 = vsel %vm343, %v274, 0
        %vm350 = vcmask 1043456
        %v352 = vsel %vm350, %v340, 0
        %v355 = vsel %vm350, %v342, 0
        %357 = vmatprep.subr.mxu0 0.0
        %358 = vmatpush1.msra.mxu0 0.0
        %359 = vmatprep.subr.mxu0 0.0
        %360 = vmatpush1.msra.mxu0 0.0
        %361 = vmatprep.subr.mxu0 0.0
        %362 = vmatpush1.msra.mxu0 0.0
        %363 = vmatprep.subr.mxu0 0.0
        %364 = vmatpush1.msra.mxu0 0.0
        %365 = vmatprep.subr.mxu0 0.0
        %366 = vmatpush1.msra.mxu0 0.0
        %367 = vmatprep.subr.mxu0 0.0
        %368 = vmatpush1.msra.mxu0 0.0
        %369 = vmatprep.subr.mxu0 0.0
        %370 = vmatpush1.msra.mxu0 0.0
        %371 = vmatprep.subr.mxu0 0.0
        %372 = vmatpush1.msra.mxu0 0.0
        %373 = vmatprep.subr.mxu0 0.0
        %374 = vmatpush1.msra.mxu0 0.0
        %375 = vmatprep.subr.mxu0 0.0
        %376 = vmatpush1.msra.mxu0 0.0
        %377 = vmatprep.subr.mxu0 0.0
        %378 = vmatpush1.msra.mxu0 0.0
        %379 = vmatprep.subr.mxu0 0.0
        %380 = vmatpush1.msra.mxu0 0.0
        %381 = vmatprep.subr.mxu0 0.0
        %382 = vmatpush1.msra.mxu0 0.0
        %383 = vmatprep.subr.mxu0 %v355
        %384 = vmatpush1.msra.mxu0 %v352
        %385 = vmatprep.subr.mxu0 %v338
        %386 = vmatpush1.msra.mxu0 %v336
        %387 = vmatprep.subr.mxu0 %v334
        %388 = vmatpush1.msra.mxu0 %v332
        %389 = vmatprep.subr.mxu0 0.0
        %390 = vmatpush2.msra.mxu0 0.0
        %391 = vmatprep.subr.mxu0 0.0
        %392 = vmatpush2.msra.mxu0 0.0
        %393 = vmatprep.subr.mxu0 0.0
        %394 = vmatpush2.msra.mxu0 0.0
        %395 = vmatprep.subr.mxu0 0.0
        %396 = vmatpush2.msra.mxu0 0.0
        %397 = vmatprep.subr.mxu0 0.0
        %398 = vmatpush2.msra.mxu0 0.0
        %399 = vmatprep.subr.mxu0 0.0
        %400 = vmatpush2.msra.mxu0 0.0
        %401 = vmatprep.subr.mxu0 0.0
        %402 = vmatpush2.msra.mxu0 0.0
        %403 = vmatprep.subr.mxu0 0.0
        %404 = vmatpush2.msra.mxu0 0.0
        %405 = vmatprep.subr.mxu0 0.0
        %406 = vmatpush2.msra.mxu0 0.0
        %407 = vmatprep.subr.mxu0 0.0
        %408 = vmatpush2.msra.mxu0 0.0
        %409 = vmatprep.subr.mxu0 0.0
        %410 = vmatpush2.msra.mxu0 0.0
        %411 = vmatprep.subr.mxu0 0.0
        %412 = vmatpush2.msra.mxu0 0.0
        %413 = vmatprep.subr.mxu0 0.0
        %414 = vmatpush2.msra.mxu0 0.0
        %415 = vmatprep.subr.mxu0 0.0
        %416 = vmatpush2.msra.mxu0 0.0
        %417 = vmatprep.subr.mxu0 0.0
        %418 = vmatpush2.msra.mxu0 0.0
        %419 = vmatprep.subr.mxu0 0.0
        %420 = vmatpush2.msra.mxu0 0.0
        %421 = vmatprep.mubr.f32.mxu0 0.0
        %422 = vmatmul.mubr.f32.gmra.mxu0 %v345
        %v423 = vpop.f32.mrf.mxu0
        %v424 = vadd.f32 %v266, %v423
        %v425 = vpop.f32.mrf.mxu0
        %v426 = vadd.f32 %v266, %v425
        %427 = vmatprep.mubr.f32.mxu0 0.0
        %428 = vmatmul.mubr.f32.gmra.mxu0 %v348
        %v429 = vpop.f32.mrf.mxu0
        %v430 = vadd.f32 %v271, %v429
        %v431 = vpop.f32.mrf.mxu0
        %v432 = vadd.f32 %v271, %v431
        %433 = vdwg.mxu0
        %434 = vst [vmem:[%s232] sm:$0xff] %v424
        %435 = vst [vmem:[%s232 + $0x8] sm:$0xff] %v426
        %436 = vst [vmem:[%s232 + $0x10] sm:$0xff] %v430
        %437 = vst [vmem:[%s232 + $0x18] sm:$0xff] %v432
        %s438 = sand.u32 %s142, 1
        %s439 = scalar_lea.sflag [#allocation3], %s438
        %s440 = sand.u32 %s142, 1
        %s441 = smul.addr %s440, 32
        %s442 = scalar_lea.vmem [#allocation2], %s441
        // Predicated region
        $region41: #{tpu_custom_call.1} parent=39 // pred_check
          %p443 = pneg %p152
        $region42: #{tpu_custom_call.1} parent=39 // pred_check_branch
          %445 = sbr.rel (%p443) target = $region44
        $region43: #{tpu_custom_call.1} parent=39 // pred_region
          %s447 = ssub.s32 512, 512
          %448 = vsyncadd %s439, %s447
          %s449 = smul.addr %s19, 4
          %s450 = smul.addr %s449, 128
          %s451 = scalar_lea.hbm %s5, %s450
          %s452 = sshll.u32 %s442, 4
          %s453 = int_to_ptr.vmem [resolvable:$true] %s452
          %458 = dma.vmem_to_hbm [thread:$0]  %s453, 512, %s451, %s439, 256, 256, 16
        $region44: #{tpu_custom_call.1} parent=39 // pred_fallthru
          _
      $region40: #{tpu_custom_call.1} parent=5 // pred_fallthru
        _
      %p459 = scmp.le.s32.totalorder 2, %s14
      // Predicated region
      $region45: #{tpu_custom_call.1} parent=5 // pred_check
        %p460 = pneg %p459
      $region46: #{tpu_custom_call.1} parent=5 // pred_check_branch
        %462 = sbr.rel (%p460) target = $region48
      $region47: #{tpu_custom_call.1} parent=5 // pred_region
        %s463 = ssub.s32 %s14, 2
        // Predicated region
        $region49: #{tpu_custom_call.1} parent=47 // pred_check
          %p464 = pneg %p158
        $region50: #{tpu_custom_call.1} parent=47 // pred_check_branch
          %466 = sbr.rel (%p464) target = $region52
        $region51: #{tpu_custom_call.1} parent=47 // pred_region
          %s467 = sand.u32 %s143, 1
          %s468 = scalar_lea.sflag [#allocation3], %s467
          %s469 = sand.u32 %s143, 1
          %s470 = smul.addr %s469, 32
          %s471 = scalar_lea.vmem [#allocation2], %s470
          %472 = dma.done %s468, 512
        $region52: #{tpu_custom_call.1} parent=47 // pred_fallthru
          _
      $region48: #{tpu_custom_call.1} parent=5 // pred_fallthru
        _
    $region6: #{tpu_custom_call.1} parent=1 // loop_footer
      %s18 = sadd.s32 1, %s14
    $region7: #{tpu_custom_call.1} parent=1 // loop_footer_branch
      %13 = sbr.rel target = $region3
    $region8: #{tpu_custom_call.1} parent=1 // loop_exit
      _
    %473 = vsyncpa [#allocation3], 1
    %s474 = scalar_lea.sflag [#allocation3], 1
    %475 = vsyncpa %s474, 1

</llo_original>
